<compile_context>
chip_gen: v6e
topology: v6e:2x2x1
jax: 0.10.0
libtpu: 0.0.40
codegen_flags: <defaults>
</compile_context>

<pallas_src>
import functools

import numpy as np
import jax
import jax.numpy as jnp
from jax.experimental import pallas as pl
from jax.experimental.pallas import tpu as pltpu

LANE = 128


def _round_up(x, m):
    return ((x + m - 1) // m) * m


def _vmem_limit_bytes():
    """~85% of the physical per-core VMEM (64 MiB fallback if the query fails)."""
    try:
        cap = int(pltpu.get_tpu_info().vmem_capacity_bytes)
    except Exception:
        cap = 64 << 20
    return int(cap * 0.85)


def _pick_batch_block(B, per_item_bytes, budget_bytes, rows_per_item, max_rows=1024):
    """Largest divisor of B whose block fits the VMEM budget (>= 1)."""
    best = 1
    for cand in range(1, B + 1):
        if B % cand:
            continue
        if cand > 1 and cand * per_item_bytes > budget_bytes:
            break
        best = cand
        if cand * rows_per_item >= max_rows:
            break
    return best


def _largest_lane_tile(total, cap, mult=LANE):
    """Largest multiple of `mult` that divides `total` and is <= cap."""
    cap = max(mult, (min(cap, total) // mult) * mult)
    best = mult
    t = mult
    while t <= cap:
        if total % t == 0:
            best = t
        t += mult
    return best


def _pick_row_tile(R, per_row_bytes, budget_bytes, target_rows=512):
    """Row-tile for the (B*C, T) filter kernel: multiple of 8 dividing R, fits VMEM,
    prefers >= 2 grid steps (v7x has 2 TensorCores)."""
    cap = max(8, min(target_rows, budget_bytes // max(per_row_bytes, 1)))
    divs = [d for d in range(8, R + 1, 8) if R % d == 0]
    fitting = [d for d in divs if d <= cap]
    if fitting:
        multi = [d for d in fitting if R // d >= 2]
        return (multi or fitting)[-1]
    return R  # full-extent block is always layout-legal


# ----------------------------------------------------------------------------
# Kernel 1: attention over the K experts (avg-pool + MLP + softmax/temperature)
# ----------------------------------------------------------------------------
def _attn_kernel(x_ref, w1_ref, b1_ref, w2_ref, b2_ref, attn_ref, *, temperature):
    x = x_ref[...]                                    # (Bb, C, T) f32
    pooled = jnp.mean(x, axis=-1)                     # (Bb, C) == AdaptiveAvgPool1d(1)
    h = jnp.dot(pooled, w1_ref[...], preferred_element_type=jnp.float32) + b1_ref[...]
    h = jnp.maximum(h, 0.0)                           # ReLU
    logits = jnp.dot(h, w2_ref[...], preferred_element_type=jnp.float32) + b2_ref[...]
    logits = logits * (1.0 / temperature)
    logits = logits - jnp.max(logits, axis=-1, keepdims=True)
    e = jnp.exp(logits)
    attn_ref[...] = e / jnp.sum(e, axis=-1, keepdims=True)


def attn_fn_pallas(x, w1, b1, w2, b2, temperature):
    B, C, T = x.shape
    H = w1.shape[1]
    K = w2.shape[1]
    limit = _vmem_limit_bytes()
    budget = min(32 << 20, max(8 << 20, limit // 4))
    # double-buffered x block + one in-kernel copy of the block (f32)
    per_item = 3 * C * T * 4
    Bb = _pick_batch_block(B, per_item, budget, rows_per_item=C)
    return pl.pallas_call(
        functools.partial(_attn_kernel, temperature=float(temperature)),
        out_shape=jax.ShapeDtypeStruct((B, K), jnp.float32),
        grid=(B // Bb,),
        in_specs=[
            pl.BlockSpec((Bb, C, T), lambda b: (b, 0, 0)),
            pl.BlockSpec((C, H), lambda b: (0, 0)),
            pl.BlockSpec((1, H), lambda b: (0, 0)),
            pl.BlockSpec((H, K), lambda b: (0, 0)),
            pl.BlockSpec((1, K), lambda b: (0, 0)),
        ],
        out_specs=pl.BlockSpec((Bb, K), lambda b: (b, 0)),
        compiler_params=pltpu.CompilerParams(
            dimension_semantics=("parallel",),
            vmem_limit_bytes=limit),
    )(x, w1, b1, w2, b2)


# ----------------------------------------------------------------------------
# Kernel 2: per-sample aggregation of the K complex filters: attn @ weight
# (weights streamed in bf16; f32 accumulation / output), tiled over C*Fpad lanes.
# ----------------------------------------------------------------------------
def _agg_kernel(attn_ref, wre_ref, wim_ref, are_ref, aim_ref):
    a = attn_ref[...].astype(jnp.bfloat16)            # (B, K)
    are_ref[...] = jnp.dot(a, wre_ref[...], preferred_element_type=jnp.float32)
    aim_ref[...] = jnp.dot(a, wim_ref[...], preferred_element_type=jnp.float32)


def agg_weight_pallas(attn, w_re_flat_bf16, w_im_flat_bf16):
    B, K = attn.shape
    total_n = w_re_flat_bf16.shape[1]                 # C * Fpad (multiple of 128)
    limit = _vmem_limit_bytes()
    budget = min(24 << 20, limit // 3)
    # per lane column (double-buffered): 2 bf16 weight tiles + 2 f32 out tiles
    per_col = 8 * K + 16 * B
    cap = max(LANE, budget // per_col)
    tn = _largest_lane_tile(total_n, cap)
    return pl.pallas_call(
        _agg_kernel,
        out_shape=(jax.ShapeDtypeStruct((B, total_n), jnp.float32),
                   jax.ShapeDtypeStruct((B, total_n), jnp.float32)),
        grid=(total_n // tn,),
        in_specs=[
            pl.BlockSpec((B, K), lambda n: (0, 0)),
            pl.BlockSpec((K, tn), lambda n: (0, n)),
            pl.BlockSpec((K, tn), lambda n: (0, n)),
        ],
        out_specs=(pl.BlockSpec((B, tn), lambda n: (0, n)),
                   pl.BlockSpec((B, tn), lambda n: (0, n))),
        compiler_params=pltpu.CompilerParams(
            dimension_semantics=("parallel",),
            vmem_limit_bytes=limit),
    )(attn, w_re_flat_bf16, w_im_flat_bf16)


# ----------------------------------------------------------------------------
# Kernel 3: fused rfft-matmul -> complex filter multiply -> irfft-matmul.
# Operates on row-flattened (B*C, T) data, gridded over row tiles.
# ----------------------------------------------------------------------------
def _dgf_kernel(x_ref, are_ref, aim_ref, fcos_ref, fsin_ref, icos_ref, isin_ref, o_ref):
    xb = x_ref[...].astype(jnp.bfloat16)                                   # (TR, T)
    # rfft (ortho): Xre = x @ (cos/sqrt(T)), Xim = x @ (-sin/sqrt(T))
    xre = jnp.dot(xb, fcos_ref[...], preferred_element_type=jnp.float32)   # (TR, Fpad)
    xim = jnp.dot(xb, fsin_ref[...], preferred_element_type=jnp.float32)   # (TR, Fpad)

    wre = are_ref[...]
    wim = aim_ref[...]
    # complex multiply X * W (f32, VPU)
    yre = (xre * wre - xim * wim).astype(jnp.bfloat16)
    yim = (xre * wim + xim * wre).astype(jnp.bfloat16)

    # irfft (ortho) with Hermitian-fold weights baked into ICos/ISin.
    out = jnp.dot(yre, icos_ref[...], preferred_element_type=jnp.float32)  # (TR, T)
    out = out + jnp.dot(yim, isin_ref[...], preferred_element_type=jnp.float32)
    o_ref[...] = out


def _build_filter_call(R, T, Fpad, TR, vmem_limit, single_buffer_dft):
    inv_kw = {"pipeline_mode": pl.Buffered(1)} if single_buffer_dft else {}
    return pl.pallas_call(
        _dgf_kernel,
        out_shape=jax.ShapeDtypeStruct((R, T), jnp.float32),
        grid=(R // TR,),
        in_specs=[
            pl.BlockSpec((TR, T), lambda r: (r, 0)),
            pl.BlockSpec((TR, Fpad), lambda r: (r, 0)),
            pl.BlockSpec((TR, Fpad), lambda r: (r, 0)),
            pl.BlockSpec((T, Fpad), lambda r: (0, 0), **inv_kw),   # grid-invariant
            pl.BlockSpec((T, Fpad), lambda r: (0, 0), **inv_kw),   # grid-invariant
            pl.BlockSpec((Fpad, T), lambda r: (0, 0), **inv_kw),   # grid-invariant
            pl.BlockSpec((Fpad, T), lambda r: (0, 0), **inv_kw),   # grid-invariant
        ],
        out_specs=pl.BlockSpec((TR, T), lambda r: (r, 0)),
        compiler_params=pltpu.CompilerParams(
            dimension_semantics=("parallel",),
            vmem_limit_bytes=vmem_limit),
    )


def sparse_dgf_filter_pallas(x_rows, agg_re_rows, agg_im_rows, fcos, fsin, icos, isin):
    R, T = x_rows.shape
    Fpad = agg_re_rows.shape[-1]
    limit = _vmem_limit_bytes()
    # 4 bf16 DFT matrices resident (single-buffered) + slack
    dft_bytes = 10 * T * Fpad
    budget = max(4 << 20, limit - dft_bytes - (4 << 20))
    # per row: 2x-buffered x/out (f32 T) + agg re/im (f32 Fpad) + in-kernel
    # intermediates (xb bf16, xre/xim f32, yre/yim bf16, out f32)
    per_row = 28 * T + 32 * Fpad
    TR = _pick_row_tile(R, per_row, budget, target_rows=512)
    args = (x_rows, agg_re_rows, agg_im_rows, fcos, fsin, icos, isin)
    try:
        return _build_filter_call(R, T, Fpad, TR, limit, True)(*args)
    except Exception:
        # TODO(synk): drop this fallback once pl.Buffered(1) single-buffering of the
        # grid-invariant DFT matrices is confirmed on all deployed jax versions.
        return _build_filter_call(R, T, Fpad, TR, limit, False)(*args)


# ----------------------------------------------------------------------------
# Host glue: cached DFT matrices, one-time parameter preparation, forward.
# ----------------------------------------------------------------------------
@functools.lru_cache(maxsize=8)
def make_dft_matrices(T, Fpad):
    F = T // 2 + 1
    t = np.arange(T, dtype=np.float64)[:, None]                  # (T, 1)
    k = np.arange(F, dtype=np.float64)[None, :]                  # (1, F)
    ang = 2.0 * np.pi * t * k / T                                # (T, F)
    scale = 1.0 / np.sqrt(T)

    fcos = np.zeros((T, Fpad), np.float32)
    fcos[:, :F] = np.cos(ang) * scale
    fsin = np.zeros((T, Fpad), np.float32)
    fsin[:, :F] = -np.sin(ang) * scale                           # rfft sign baked in

    wk = np.full((F,), 2.0, dtype=np.float64)                    # Hermitian fold weights
    wk[0] = 1.0
    if T % 2 == 0:
        wk[-1] = 1.0
    icos = np.zeros((Fpad, T), np.float32)
    icos[:F, :] = (wk[:, None] * np.cos(ang.T)) * scale
    isin = np.zeros((Fpad, T), np.float32)
    isin[:F, :] = -(wk[:, None] * np.sin(ang.T)) * scale

    cast = lambda a: jnp.asarray(a, jnp.bfloat16)
    return cast(fcos), cast(fsin), cast(icos), cast(isin)


def prepare_params(params, T):
    """One-time padding / flattening / bf16 cast of the complex filter bank."""
    cw = params["complex_weight"]                                # (K, C, F, 2)
    K, C, F, _ = cw.shape
    if F != T // 2 + 1:
        # TODO(synk): F.interpolate bilinear weight-resize branch not implemented.
        raise NotImplementedError("weight F must equal T//2 + 1")
    Fpad = _round_up(F, LANE)
    w_re = jnp.zeros((K, C, Fpad), jnp.float32).at[:, :, :F].set(cw[..., 0])
    w_im = jnp.zeros((K, C, Fpad), jnp.float32).at[:, :, :F].set(cw[..., 1])
    prepared = dict(params)
    prepared["Fpad"] = Fpad
    prepared["w_re_flat_bf16"] = w_re.reshape(K, C * Fpad).astype(jnp.bfloat16)
    prepared["w_im_flat_bf16"] = w_im.reshape(K, C * Fpad).astype(jnp.bfloat16)
    return prepared


def sparse_dgf_forward(x, params, temperature):
    B, C, T = x.shape
    if "w_re_flat_bf16" not in params:
        params = prepare_params(params, T)
    Fpad = params["Fpad"]

    attn = attn_fn_pallas(x, params["w1"], params["b1"],
                          params["w2"], params["b2"], temperature)        # (B, K)
    agg_re_flat, agg_im_flat = agg_weight_pallas(
        attn, params["w_re_flat_bf16"], params["w_im_flat_bf16"])         # (B, C*Fpad)

    # Row-flatten everything (free, row-major contiguous reshapes).
    agg_re_rows = agg_re_flat.reshape(B * C, Fpad)
    agg_im_rows = agg_im_flat.reshape(B * C, Fpad)
    x_rows = x.reshape(B * C, T)

    fcos, fsin, icos, isin = make_dft_matrices(T, Fpad)
    out_rows = sparse_dgf_filter_pallas(x_rows, agg_re_rows, agg_im_rows,
                                        fcos, fsin, icos, isin)
    return out_rows.reshape(B, C, T), attn


def reference_forward(x, params, temperature):
    """Pure-JAX reference (uses jnp.fft) for correctness check."""
    B, C, T = x.shape
    cw = params["complex_weight"]
    K = cw.shape[0]
    pooled = x.mean(-1)
    h = jnp.maximum(pooled @ params["w1"] + params["b1"][0], 0.0)
    logits = (h @ params["w2"] + params["b2"][0]) / temperature
    attn = jax.nn.softmax(logits, axis=-1)
    xf = jnp.fft.rfft(x, axis=-1, norm="ortho")
    agg = (attn @ cw.reshape(K, -1)).reshape(B, C, -1, 2)
    wc = agg[..., 0] + 1j * agg[..., 1]
    return jnp.fft.irfft(xf * wc, n=T, axis=-1, norm="ortho")


if __name__ == "__main__":
    # Module hyper-parameters (small, consistent with the module's forward).
    B, dim, T = 2, 8, 16
    ratios, K, temperature, dropout = 0.5, 4, 4.0, 0.1
    hidden = max(int(dim * ratios), 1)
    F = T // 2 + 1

    key = jax.random.PRNGKey(0)
    k0, k1, k2, k3, k4, k5 = jax.random.split(key, 6)

    # Deterministic parameter init (shapes match the PyTorch __init__).
    params = {
        "complex_weight": jax.random.normal(k0, (K, dim, F, 2), jnp.float32) * 0.02,
        # attn_fn 1x1-conv weights, stored transposed for right-multiplication.
        "w1": jax.random.normal(k1, (dim, hidden), jnp.float32) * 0.02,     # fc1
        "b1": jnp.zeros((1, hidden), jnp.float32),
        "w2": jax.random.normal(k2, (hidden, K), jnp.float32) * 0.02,       # fc2
        "b2": jax.random.normal(k3, (1, K), jnp.float32) * 0.02,
    }

    x = jax.random.normal(k4, (B, dim, T), jnp.float32)

    params = prepare_params(params, T)          # one-time weight padding / bf16 cast
    out, attn = sparse_dgf_forward(x, params, temperature)
    out = jax.block_until_ready(out)

    ref = jax.block_until_ready(reference_forward(x, params, temperature))
    # bf16 matmul operands / bf16-streamed weights (f32 accumulation)
    # -> slightly relaxed tolerance vs the complex-fft reference.
    np.testing.assert_allclose(np.asarray(out), np.asarray(ref), rtol=5e-2, atol=1e-2)

    print("KERNEL_OK")
</pallas_src>

<mosaic_0001>
module attributes {stable_mosaic.version = 11 : i64} {
  func.func @_attn_kernel(%arg0: i32, %arg1: memref<2x8x16xf32, #tpu.memory_space<vmem>>, %arg2: memref<8x4xf32, #tpu.memory_space<vmem>>, %arg3: memref<1x4xf32, #tpu.memory_space<vmem>>, %arg4: memref<4x4xf32, #tpu.memory_space<vmem>>, %arg5: memref<1x4xf32, #tpu.memory_space<vmem>>, %arg6: memref<2x4xf32, #tpu.memory_space<vmem>>) attributes {dimension_semantics = [#tpu.dimension_semantics<parallel>], iteration_bounds = array<i64: 1>, scalar_prefetch = 0 : i64, scratch_operands = 0 : i64, tpu.core_type = #tpu.core_type<tc>, window_params = [{transform_indices = @transform_0, window_bounds = array<i64: 2, 8, 16>}, {pipeline_mode = #tpu.pipeline_mode<synchronous>, transform_indices = @transform_1, window_bounds = array<i64: 8, 4>}, {pipeline_mode = #tpu.pipeline_mode<synchronous>, transform_indices = @transform_2, window_bounds = array<i64: 1, 4>}, {pipeline_mode = #tpu.pipeline_mode<synchronous>, transform_indices = @transform_3, window_bounds = array<i64: 4, 4>}, {pipeline_mode = #tpu.pipeline_mode<synchronous>, transform_indices = @transform_4, window_bounds = array<i64: 1, 4>}, {transform_indices = @transform_5, window_bounds = array<i64: 2, 4>}]} {
    %c0 = arith.constant 0 : index
    %c0_0 = arith.constant 0 : index
    %c0_1 = arith.constant 0 : index
    %0 = vector.load %arg1[%c0, %c0_0, %c0_1] : memref<2x8x16xf32, #tpu.memory_space<vmem>>, vector<2x8x16xf32>
    %cst = arith.constant dense<0.000000e+00> : vector<2x8xf32>
    %1 = vector.multi_reduction <add>, %0, %cst [2] : vector<2x8x16xf32> to vector<2x8xf32>
    %cst_2 = arith.constant 1.600000e+01 : f32
    %2 = vector.broadcast %cst_2 : f32 to vector<2x8xf32>
    %3 = arith.divf %1, %2 : vector<2x8xf32>
    %c0_3 = arith.constant 0 : index
    %c0_4 = arith.constant 0 : index
    %4 = vector.load %arg2[%c0_3, %c0_4] : memref<8x4xf32, #tpu.memory_space<vmem>>, vector<8x4xf32>
    %cst_5 = arith.constant dense<0.000000e+00> : vector<2x4xf32>
    %5 = tpu.matmul %3, %4, %cst_5 {dimension_numbers = #tpu.dot_dimension_numbers<[1], [0], [0], [1], [0, 0, 1, 1], [], []>} : vector<2x8xf32>, vector<8x4xf32>, vector<2x4xf32> -> vector<2x4xf32>
    %c0_6 = arith.constant 0 : index
    %c0_7 = arith.constant 0 : index
    %6 = vector.load %arg3[%c0_6, %c0_7] : memref<1x4xf32, #tpu.memory_space<vmem>>, vector<1x4xf32>
    %7 = vector.broadcast %6 : vector<1x4xf32> to vector<2x4xf32>
    %8 = arith.addf %5, %7 : vector<2x4xf32>
    %cst_8 = arith.constant 0.000000e+00 : f32
    %9 = vector.broadcast %cst_8 : f32 to vector<2x4xf32>
    %10 = arith.maximumf %8, %9 : vector<2x4xf32>
    %c0_9 = arith.constant 0 : index
    %c0_10 = arith.constant 0 : index
    %11 = vector.load %arg4[%c0_9, %c0_10] : memref<4x4xf32, #tpu.memory_space<vmem>>, vector<4x4xf32>
    %cst_11 = arith.constant dense<0.000000e+00> : vector<2x4xf32>
    %12 = tpu.matmul %10, %11, %cst_11 {dimension_numbers = #tpu.dot_dimension_numbers<[1], [0], [0], [1], [0, 0, 1, 1], [], []>} : vector<2x4xf32>, vector<4x4xf32>, vector<2x4xf32> -> vector<2x4xf32>
    %c0_12 = arith.constant 0 : index
    %c0_13 = arith.constant 0 : index
    %13 = vector.load %arg5[%c0_12, %c0_13] : memref<1x4xf32, #tpu.memory_space<vmem>>, vector<1x4xf32>
    %14 = vector.broadcast %13 : vector<1x4xf32> to vector<2x4xf32>
    %15 = arith.addf %12, %14 : vector<2x4xf32>
    %cst_14 = arith.constant 2.500000e-01 : f32
    %16 = vector.broadcast %cst_14 : f32 to vector<2x4xf32>
    %17 = arith.mulf %15, %16 : vector<2x4xf32>
    %cst_15 = arith.constant dense<0xFF800000> : vector<2xf32>
    %18 = vector.multi_reduction <maximumf>, %17, %cst_15 [1] : vector<2x4xf32> to vector<2xf32>
    %19 = vector.shape_cast %18 : vector<2xf32> to vector<2x1xf32>
    %20 = vector.broadcast %19 : vector<2x1xf32> to vector<2x4xf32>
    %21 = arith.subf %17, %20 : vector<2x4xf32>
    %22 = math.exp %21 : vector<2x4xf32>
    %cst_16 = arith.constant dense<0.000000e+00> : vector<2xf32>
    %23 = vector.multi_reduction <add>, %22, %cst_16 [1] : vector<2x4xf32> to vector<2xf32>
    %24 = vector.shape_cast %23 : vector<2xf32> to vector<2x1xf32>
    %25 = vector.broadcast %24 : vector<2x1xf32> to vector<2x4xf32>
    %26 = arith.divf %22, %25 : vector<2x4xf32>
    %c0_17 = arith.constant 0 : index
    %c0_18 = arith.constant 0 : index
    %27 = vector.load %arg6[%c0_17, %c0_18] : memref<2x4xf32, #tpu.memory_space<vmem>>, vector<2x4xf32>
    tpu.vector_store %arg6[%c0_17, %c0_18], %26 {strides = array<i32>} : memref<2x4xf32, #tpu.memory_space<vmem>>, vector<2x4xf32>,
    return
  }
  func.func @transform_0(%arg0: i32) -> (i32, i32, i32) {
    %c0_i32 = arith.constant 0 : i32
    %c0_i32_0 = arith.constant 0 : i32
    %c0_i32_1 = arith.constant 0 : i32
    return %arg0, %c0_i32, %c0_i32_0 : i32, i32, i32
  }
  func.func @transform_1(%arg0: i32) -> (i32, i32) {
    %c0_i32 = arith.constant 0 : i32
    %c0_i32_0 = arith.constant 0 : i32
    %c0_i32_1 = arith.constant 0 : i32
    return %c0_i32, %c0_i32_0 : i32, i32
  }
  func.func @transform_2(%arg0: i32) -> (i32, i32) {
    %c0_i32 = arith.constant 0 : i32
    %c0_i32_0 = arith.constant 0 : i32
    %c0_i32_1 = arith.constant 0 : i32
    return %c0_i32, %c0_i32_0 : i32, i32
  }
  func.func @transform_3(%arg0: i32) -> (i32, i32) {
    %c0_i32 = arith.constant 0 : i32
    %c0_i32_0 = arith.constant 0 : i32
    %c0_i32_1 = arith.constant 0 : i32
    return %c0_i32, %c0_i32_0 : i32, i32
  }
  func.func @transform_4(%arg0: i32) -> (i32, i32) {
    %c0_i32 = arith.constant 0 : i32
    %c0_i32_0 = arith.constant 0 : i32
    %c0_i32_1 = arith.constant 0 : i32
    return %c0_i32, %c0_i32_0 : i32, i32
  }
  func.func @transform_5(%arg0: i32) -> (i32, i32) {
    %c0_i32 = arith.constant 0 : i32
    %c0_i32_0 = arith.constant 0 : i32
    return %arg0, %c0_i32 : i32, i32
  }
}

</mosaic_0001>

<llo_original>
// kernel: tpu_custom_call.1
$region0: #{tpu_custom_call.1}
  #allocation0 [shape = 'u32[]', space=smem, size = 0x4, offset = 0x4, fixed_abs, tag = 'smem constant byte address 0x4 - core index']
  #allocation1 [shape = 'u32[144,128]{1,0:T(1,128)}', space=vmem, size = 0x12000, scoped, tag = 'internal scratch']
  %s0 = inlined_call_operand.hbm [shape: f32[2,8,16], index: 0, kind: input, shape index: {}]
  %s1 = inlined_call_operand.vmem [shape: f32[8,4], index: 1, kind: input, shape index: {}]
  %s2 = inlined_call_operand.vmem [shape: f32[1,4], index: 2, kind: input, shape index: {}]
  %s3 = inlined_call_operand.vmem [shape: f32[4,4], index: 3, kind: input, shape index: {}]
  %s4 = inlined_call_operand.vmem [shape: f32[1,4], index: 4, kind: input, shape index: {}]
  %s5 = inlined_call_operand.hbm [shape: f32[2,4], index: 5, kind: output, shape index: {}]
  %s6 = sld [smem:[#allocation0]]
  $region34: #{tpu_custom_call.1} parent=0
    _
  %s8 = ssub.s32 1, %s6
  %s9 = scalar_select 0, %s8, %s6
  $region1: #{tpu_custom_call.1} parent=0
    #allocation2 [shape = 'u8[8192]{0}', space=vmem, size = 0x2000, scoped, tag = 'input window, operand 0, single buffered']
    #allocation3 [shape = 's32[1]{0}', space=sflag, size = 0x4, scoped, tag = 'scoped memory for tpu_custom_call.1']
    #allocation4 [shape = 's32[1]{0}', space=sflag, size = 0x4, scoped, tag = 'scoped memory for tpu_custom_call.1']
    #allocation5 [shape = 'u8[1024]{0}', space=vmem, size = 0x400, scoped, tag = 'output window, operand 0, single buffered']
    %10 = vsyncpa [#allocation3], 0
    %11 = vsyncpa [#allocation4], 0
    // Predicated region
    $region2: #{tpu_custom_call.1} parent=1 // pred_check
      _
    $region3: #{tpu_custom_call.1} parent=1 // pred_check_branch
      %13 = sbr.rel (0) target = $region5
    $region4: #{tpu_custom_call.1} parent=1 // pred_region
      %s15 = ssub.s32 256, 256
      %16 = vsyncadd [#allocation3], %s15
      %s17 = sshll.u32 [#allocation2], 4
      %s18 = int_to_ptr.vmem [resolvable:$true] %s17
      %23 = dma.hbm_to_vmem [thread:$0]  %s0, 256, %s18, [#allocation3], 128, 128, 8
    $region5: #{tpu_custom_call.1} parent=1 // pred_fallthru
      _
    // Predicated region
    $region6: #{tpu_custom_call.1} parent=1 // pred_check
      _
    $region7: #{tpu_custom_call.1} parent=1 // pred_check_branch
      %25 = sbr.rel (0) target = $region9
    $region8: #{tpu_custom_call.1} parent=1 // pred_region
      _
    $region9: #{tpu_custom_call.1} parent=1 // pred_fallthru
      _
    // Predicated region
    $region10: #{tpu_custom_call.1} parent=1 // pred_check
      _
    $region11: #{tpu_custom_call.1} parent=1 // pred_check_branch
      %27 = sbr.rel (0) target = $region13
    $region12: #{tpu_custom_call.1} parent=1 // pred_region
      _
    $region13: #{tpu_custom_call.1} parent=1 // pred_fallthru
      _
    // Predicated region
    $region14: #{tpu_custom_call.1} parent=1 // pred_check
      _
    $region15: #{tpu_custom_call.1} parent=1 // pred_check_branch
      %29 = sbr.rel (0) target = $region17
    $region16: #{tpu_custom_call.1} parent=1 // pred_region
      _
    $region17: #{tpu_custom_call.1} parent=1 // pred_fallthru
      _
    // Predicated region
    $region18: #{tpu_custom_call.1} parent=1 // pred_check
      _
    $region19: #{tpu_custom_call.1} parent=1 // pred_check_branch
      %31 = sbr.rel (0) target = $region21
    $region20: #{tpu_custom_call.1} parent=1 // pred_region
      _
    $region21: #{tpu_custom_call.1} parent=1 // pred_fallthru
      _
    // Predicated region
    $region22: #{tpu_custom_call.1} parent=1 // pred_check
      _
    $region23: #{tpu_custom_call.1} parent=1 // pred_check_branch
      %33 = sbr.rel (0) target = $region25
    $region24: #{tpu_custom_call.1} parent=1 // pred_region
      %34 = dma.done [#allocation3], 256
    $region25: #{tpu_custom_call.1} parent=1 // pred_fallthru
      _
    %v35 = vld [vmem:[#allocation2] sm:$0xff]
    %v36 = vld [vmem:[#allocation2 + $0x8] sm:$0xff]
    %vm37 = vcmask 130048
    %v38 = vsel %vm37, %v35, 0.0
    %39 = vadd.xlane.f32.xlu0 %v38
    %v40 = vpop.xlane.xlu0 %39
    %v41 = vsel %vm37, %v36, 0.0
    %42 = vadd.xlane.f32.xlu0 %v41
    %v43 = vpop.xlane.xlu0 %42
    %v44 = vrcp.pop 16.0
    %v45 = vmul.f32 %v40, %v44
    %v46 = vmul.f32 %v43, %v44
    %v47 = vld [vmem:[%s1] sm:$0xff]
    %v48 = vld [vmem:[%s2] sm:$0x1]
    %v50 = vlaneseq
    %v51 = vshrl.u32 %v50, 7
    %v52 = vsub.s32 0, %v51
    %v53 = vrot.slane %v48, %v52
    %v57 = vlaneseq
    %v58 = vand.u32 %v57, 127
    %v59 = vlaneseq
    %v60 = vshrl.u32 %v59, 7
    %v61 = vsub.s32 %v58, %v60
    %v62 = vrot.slane %v45, %v61
    %v63 = vlaneseq
    %v64 = vshrl.u32 %v63, 7
    %v65 = vsub.s32 %v58, %v64
    %v66 = vrot.slane %v46, %v65
    %vm67 = vcmask 1041409
    %v68 = vsel %vm67, %v66, %v62
    %vm69 = vcmask 64512
    %v70 = vsel %vm69, %v68, 0
    %72 = vmatprep.subr.mxu0 0.0
    %73 = vmatpush1.msra.mxu0 0.0
    %74 = vmatprep.subr.mxu0 0.0
    %75 = vmatpush1.msra.mxu0 0.0
    %76 = vmatprep.subr.mxu0 0.0
    %77 = vmatpush1.msra.mxu0 0.0
    %78 = vmatprep.subr.mxu0 0.0
    %79 = vmatpush1.msra.mxu0 0.0
    %80 = vmatprep.subr.mxu0 0.0
    %81 = vmatpush1.msra.mxu0 0.0
    %82 = vmatprep.subr.mxu0 0.0
    %83 = vmatpush1.msra.mxu0 0.0
    %84 = vmatprep.subr.mxu0 0.0
    %85 = vmatpush1.msra.mxu0 0.0
    %86 = vmatprep.subr.mxu0 0.0
    %87 = vmatpush1.msra.mxu0 0.0
    %88 = vmatprep.subr.mxu0 0.0
    %89 = vmatpush1.msra.mxu0 0.0
    %90 = vmatprep.subr.mxu0 0.0
    %91 = vmatpush1.msra.mxu0 0.0
    %92 = vmatprep.subr.mxu0 0.0
    %93 = vmatpush1.msra.mxu0 0.0
    %94 = vmatprep.subr.mxu0 0.0
    %95 = vmatpush1.msra.mxu0 0.0
    %96 = vmatprep.subr.mxu0 0.0
    %97 = vmatpush1.msra.mxu0 0.0
    %98 = vmatprep.subr.mxu0 0.0
    %99 = vmatpush1.msra.mxu0 0.0
    %100 = vmatprep.subr.mxu0 0.0
    %101 = vmatpush1.msra.mxu0 0.0
    %102 = vmatprep.subr.mxu0 0.0
    %103 = vmatpush1.msra.mxu0 %v47
    %104 = vmatprep.subr.mxu0 0.0
    %105 = vmatpush2.msra.mxu0 0.0
    %106 = vmatprep.subr.mxu0 0.0
    %107 = vmatpush2.msra.mxu0 0.0
    %108 = vmatprep.subr.mxu0 0.0
    %109 = vmatpush2.msra.mxu0 0.0
    %110 = vmatprep.subr.mxu0 0.0
    %111 = vmatpush2.msra.mxu0 0.0
    %112 = vmatprep.subr.mxu0 0.0
    %113 = vmatpush2.msra.mxu0 0.0
    %114 = vmatprep.subr.mxu0 0.0
    %115 = vmatpush2.msra.mxu0 0.0
    %116 = vmatprep.subr.mxu0 0.0
    %117 = vmatpush2.msra.mxu0 0.0
    %118 = vmatprep.subr.mxu0 0.0
    %119 = vmatpush2.msra.mxu0 0.0
    %120 = vmatprep.subr.mxu0 0.0
    %121 = vmatpush2.msra.mxu0 0.0
    %122 = vmatprep.subr.mxu0 0.0
    %123 = vmatpush2.msra.mxu0 0.0
    %124 = vmatprep.subr.mxu0 0.0
    %125 = vmatpush2.msra.mxu0 0.0
    %126 = vmatprep.subr.mxu0 0.0
    %127 = vmatpush2.msra.mxu0 0.0
    %128 = vmatprep.subr.mxu0 0.0
    %129 = vmatpush2.msra.mxu0 0.0
    %130 = vmatprep.subr.mxu0 0.0
    %131 = vmatpush2.msra.mxu0 0.0
    %132 = vmatprep.subr.mxu0 0.0
    %133 = vmatpush2.msra.mxu0 0.0
    %134 = vmatprep.subr.mxu0 0.0
    %135 = vmatpush2.msra.mxu0 0.0
    %136 = vmatprep.mubr.f32.mxu0 0.0
    %137 = vmatmul.mubr.f32.gmra.mxu0 %v70
    %v138 = vpop.f32.mrf.mxu0
    %v139 = vadd.f32 %v53, %v138
    %v140 = vpop.f32.mrf.mxu0
    %141 = vdwg.mxu0
    %v142 = vmax.f32 %v139, 0.0
    %v143 = vld [vmem:[%s3] sm:$0xf]
    %v144 = vld [vmem:[%s4] sm:$0x1]
    %v146 = vlaneseq
    %v147 = vshrl.u32 %v146, 7
    %v148 = vsub.s32 0, %v147
    %v149 = vrot.slane %v144, %v148
    %vm151 = vcmask 31744
    %v153 = vsel %vm151, %v142, 0
    %vm155 = vcmask 1043456
    %v157 = vsel %vm155, %v143, 0
    %159 = vmatprep.subr.mxu0 0.0
    %160 = vmatpush1.msra.mxu0 0.0
    %161 = vmatprep.subr.mxu0 0.0
    %162 = vmatpush1.msra.mxu0 0.0
    %163 = vmatprep.subr.mxu0 0.0
    %164 = vmatpush1.msra.mxu0 0.0
    %165 = vmatprep.subr.mxu0 0.0
    %166 = vmatpush1.msra.mxu0 0.0
    %167 = vmatprep.subr.mxu0 0.0
    %168 = vmatpush1.msra.mxu0 0.0
    %169 = vmatprep.subr.mxu0 0.0
    %170 = vmatpush1.msra.mxu0 0.0
    %171 = vmatprep.subr.mxu0 0.0
    %172 = vmatpush1.msra.mxu0 0.0
    %173 = vmatprep.subr.mxu0 0.0
    %174 = vmatpush1.msra.mxu0 0.0
    %175 = vmatprep.subr.mxu0 0.0
    %176 = vmatpush1.msra.mxu0 0.0
    %177 = vmatprep.subr.mxu0 0.0
    %178 = vmatpush1.msra.mxu0 0.0
    %179 = vmatprep.subr.mxu0 0.0
    %180 = vmatpush1.msra.mxu0 0.0
    %181 = vmatprep.subr.mxu0 0.0
    %182 = vmatpush1.msra.mxu0 0.0
    %183 = vmatprep.subr.mxu0 0.0
    %184 = vmatpush1.msra.mxu0 0.0
    %185 = vmatprep.subr.mxu0 0.0
    %186 = vmatpush1.msra.mxu0 0.0
    %187 = vmatprep.subr.mxu0 0.0
    %188 = vmatpush1.msra.mxu0 0.0
    %189 = vmatprep.subr.mxu0 0.0
    %190 = vmatpush1.msra.mxu0 %v157
    %191 = vmatprep.subr.mxu0 0.0
    %192 = vmatpush2.msra.mxu0 0.0
    %193 = vmatprep.subr.mxu0 0.0
    %194 = vmatpush2.msra.mxu0 0.0
    %195 = vmatprep.subr.mxu0 0.0
    %196 = vmatpush2.msra.mxu0 0.0
    %197 = vmatprep.subr.mxu0 0.0
    %198 = vmatpush2.msra.mxu0 0.0
    %199 = vmatprep.subr.mxu0 0.0
    %200 = vmatpush2.msra.mxu0 0.0
    %201 = vmatprep.subr.mxu0 0.0
    %202 = vmatpush2.msra.mxu0 0.0
    %203 = vmatprep.subr.mxu0 0.0
    %204 = vmatpush2.msra.mxu0 0.0
    %205 = vmatprep.subr.mxu0 0.0
    %206 = vmatpush2.msra.mxu0 0.0
    %207 = vmatprep.subr.mxu0 0.0
    %208 = vmatpush2.msra.mxu0 0.0
    %209 = vmatprep.subr.mxu0 0.0
    %210 = vmatpush2.msra.mxu0 0.0
    %211 = vmatprep.subr.mxu0 0.0
    %212 = vmatpush2.msra.mxu0 0.0
    %213 = vmatprep.subr.mxu0 0.0
    %214 = vmatpush2.msra.mxu0 0.0
    %215 = vmatprep.subr.mxu0 0.0
    %216 = vmatpush2.msra.mxu0 0.0
    %217 = vmatprep.subr.mxu0 0.0
    %218 = vmatpush2.msra.mxu0 0.0
    %219 = vmatprep.subr.mxu0 0.0
    %220 = vmatpush2.msra.mxu0 0.0
    %221 = vmatprep.subr.mxu0 0.0
    %222 = vmatpush2.msra.mxu0 0.0
    %223 = vmatprep.mubr.f32.mxu0 0.0
    %224 = vmatmul.mubr.f32.gmra.mxu0 %v153
    %v225 = vpop.f32.mrf.mxu0
    %v226 = vadd.f32 %v149, %v225
    %v227 = vpop.f32.mrf.mxu0
    %228 = vdwg.mxu0
    %v229 = vmul.f32 %v226, 0.25
    %vm230 = vcmask 25600
    %v231 = vsel %vm230, %v229, -inf
    %232 = vmax.xlane.f32.xlu0 %v231
    %v233 = vpop.xlane.xlu0 %232
    %v234 = vsub.f32 %v229, %v233
    %v235 = vmul.f32 %v234, 1.442695
    %v236 = vpow.pop %v235
    %v237 = vsel %vm230, %v236, 0.0
    %238 = vadd.xlane.f32.xlu0 %v237
    %v239 = vpop.xlane.xlu0 %238
    %v240 = vrcp.pop %v239
    %v241 = vmul.f32 %v236, %v240
    %242 = vst.msk [vmem:[#allocation5] sm:$0x3] %vm230, %v241
    // Predicated region
    $region26: #{tpu_custom_call.1} parent=1 // pred_check
      _
    $region27: #{tpu_custom_call.1} parent=1 // pred_check_branch
      %244 = sbr.rel (0) target = $region29
    $region28: #{tpu_custom_call.1} parent=1 // pred_region
      %s246 = ssub.s32 32, 32
      %247 = vsyncadd [#allocation4], %s246
      %s249 = sshll.u32 [#allocation5], 4
      %s250 = int_to_ptr.vmem [resolvable:$true] %s249
      %252 = dma.vmem_to_hbm [thread:$0]  %s250, 32, %s5, [#allocation4]
    $region29: #{tpu_custom_call.1} parent=1 // pred_fallthru
      _
    // Predicated region
    $region30: #{tpu_custom_call.1} parent=1 // pred_check
      _
    $region31: #{tpu_custom_call.1} parent=1 // pred_check_branch
      %254 = sbr.rel (0) target = $region33
    $region32: #{tpu_custom_call.1} parent=1 // pred_region
      %255 = dma.done [#allocation4], 32
    $region33: #{tpu_custom_call.1} parent=1 // pred_fallthru
      _
    %256 = vsyncpa [#allocation3], 1
    %257 = vsyncpa [#allocation4], 1

</llo_original>
